<compile_context>
chip_gen: v7x
topology: tpu7x:2x2x1
jax: 0.10.0
libtpu: 0.0.40
codegen_flags: <defaults>
</compile_context>

<pallas_src>
import jax
import jax.numpy as jnp
import numpy as np
from jax.experimental import pallas as pl
from jax.experimental.pallas import tpu as pltpu


_PACK = 8  # sublane packing factor: each channel's spatial stream fills 8 sublane rows


def _make_kernel(c_in, c_out):
    def kernel(w_ref, b_ref, x_ref, o_ref):
        # w_ref: SMEM (c_out, c_in) f32 scalars, b_ref: SMEM (c_out,) f32 scalars
        # x_ref: VMEM (c_in*_PACK, T), o_ref: VMEM (c_out*_PACK, T)
        # Per-channel dense (8, T) slabs; compute in f32 (v5e has no bf16 VPU/EUP path).
        xs = [x_ref[pl.ds(ci * _PACK, _PACK), :].astype(jnp.float32)
              for ci in range(c_in)]

        # 1x1x1 conv == per-voxel channel contraction: unrolled broadcast FMAs (VPU only).
        logits = []
        for co in range(c_out):
            acc = xs[0] * w_ref[co, 0] + b_ref[co]
            for ci in range(1, c_in):
                acc = acc + xs[ci] * w_ref[co, ci]
            logits.append(acc)

        # Softmax over the c_out logits: purely elementwise, no cross-lane traffic.
        m = logits[0]
        for co in range(1, c_out):
            m = jnp.maximum(m, logits[co])
        es = [jnp.exp(l - m) for l in logits]          # EUP
        denom = es[0]
        for co in range(1, c_out):
            denom = denom + es[co]

        # EUP approx reciprocal + one Newton-Raphson step: ~2^-24 relative error,
        # keeps the divide off the VALU and well inside the 1e-5 tolerance.
        inv = pl.reciprocal(denom, approx=True)
        inv = inv * (2.0 - denom * inv)

        for co in range(c_out):
            o_ref[pl.ds(co * _PACK, _PACK), :] = (es[co] * inv).astype(o_ref.dtype)

    return kernel


def _choose_lane_tile(sp, t_max=2048, min_steps=2):
    """Largest multiple-of-128 divisor of sp that is <= t_max, preferring >= min_steps
    grid steps along the spatial axis (keeps both v7x TensorCores busy)."""
    k = sp // 128
    divs = [d for d in range(1, k + 1) if k % d == 0 and 128 * d <= t_max]
    pref = [d for d in divs if (k // d) >= min_steps]
    return 128 * (max(pref) if pref else max(divs))


def out_layer_pallas(x_ncdhw, weight, bias, *, lane_tile_max=2048):
    """x_ncdhw: (N, C_in, D, H, W); weight: (C_out, C_in) (1x1x1 conv kernel squeezed);
    bias: (C_out,). Returns (N, C_out, D, H, W) with softmax over the channel dim."""
    N, C_in, D, H, W = x_ncdhw.shape
    C_out, C_in_w = weight.shape
    assert C_in_w == C_in
    S = D * H * W

    # Native NCDHW is already channels-on-sublane / spatial-on-lane after a free reshape.
    x3d = x_ncdhw.reshape(N, C_in, S)

    # Spatial axis must split into 8 sublane rows x multiple-of-128 lanes.
    S_pad = -(-S // (_PACK * 128)) * (_PACK * 128)
    if S_pad != S:
        # TODO(synk): for ragged production shapes, mask the tail in-kernel instead of
        # this HBM pad copy (it is a no-op for the shapes used here: S is a multiple of 1024).
        x3d = jnp.pad(x3d, ((0, 0), (0, 0), (0, S_pad - S)))

    sp = S_pad // _PACK
    # Pack each channel's spatial stream into 8 dense sublane rows (free reshape).
    x_packed = x3d.reshape(N, C_in * _PACK, sp)

    t = _choose_lane_tile(sp, t_max=lane_tile_max)
    grid = (N, sp // t)

    out_packed = pl.pallas_call(
        _make_kernel(C_in, C_out),
        out_shape=jax.ShapeDtypeStruct((N, C_out * _PACK, sp), x_ncdhw.dtype),
        grid_spec=pltpu.PrefetchScalarGridSpec(
            # weight (12 floats) + bias (3 floats) are scalar-prefetched into SMEM once.
            num_scalar_prefetch=2,
            grid=grid,
            in_specs=[
                pl.BlockSpec((None, C_in * _PACK, t), lambda n, s, w, b: (n, 0, s)),
            ],
            out_specs=pl.BlockSpec((None, C_out * _PACK, t), lambda n, s, w, b: (n, 0, s)),
        ),
        compiler_params=pltpu.CompilerParams(
            dimension_semantics=("parallel", "parallel")),
    )(weight.astype(jnp.float32), bias.astype(jnp.float32), x_packed)

    out = out_packed.reshape(N, C_out, S_pad)
    if S_pad != S:
        out = out[:, :, :S]
    return out.reshape(N, C_out, D, H, W)


if __name__ == "__main__":
    key = jax.random.PRNGKey(0)
    k_x, k_w, k_b = jax.random.split(key, 3)

    # Small shapes consistent with the module: batch=2, in_channels=4, D=8, H=16, W=16,
    # num_labels=3.
    N, C_in, D, H, W = 2, 4, 8, 16, 16
    num_labels = 3

    x = jax.random.normal(k_x, (N, C_in, D, H, W), dtype=jnp.float32)
    # Deterministic "Conv3d" parameters (kernel_size=1 -> weight squeezed to (C_out, C_in)).
    weight = 0.1 * jax.random.normal(k_w, (num_labels, C_in), dtype=jnp.float32)
    bias = 0.05 * jax.random.normal(k_b, (num_labels,), dtype=jnp.float32)

    y = out_layer_pallas(x, weight, bias)
    y = jax.block_until_ready(y)

    # Reference in plain JAX (1x1x1 conv == channel matmul, softmax over dim=1).
    logits_ref = jnp.einsum("ncdhw,oc->nodhw", x, weight) + bias[None, :, None, None, None]
    y_ref = jax.nn.softmax(logits_ref, axis=1)
    np.testing.assert_allclose(np.asarray(y), np.asarray(y_ref), rtol=1e-5, atol=1e-5)
    assert y.shape == (N, num_labels, D, H, W)

    print("KERNEL_OK")
</pallas_src>

<mosaic_0001>
module attributes {stable_mosaic.version = 11 : i64} {
  func.func @kernel(%arg0: i32, %arg1: i32, %arg2: memref<3x4xf32, #tpu.memory_space<smem>>, %arg3: memref<3xf32, #tpu.memory_space<smem>>, %arg4: memref<1x32x128xf32, #tpu.memory_space<vmem>>, %arg5: memref<1x24x128xf32, #tpu.memory_space<vmem>>) attributes {dimension_semantics = [#tpu.dimension_semantics<parallel>, #tpu.dimension_semantics<parallel>], iteration_bounds = array<i64: 2, 2>, scalar_prefetch = 2 : i64, scratch_operands = 0 : i64, tpu.core_type = #tpu.core_type<tc>, window_params = [{transform_indices = @transform_0, window_bounds = array<i64: 1, 32, 128>}, {transform_indices = @transform_1, window_bounds = array<i64: 1, 24, 128>}]} {
    %c0 = arith.constant 0 : index
    %c0_0 = arith.constant 0 : index
    %c0_1 = arith.constant 0 : index
    %0 = vector.load %arg4[%c0, %c0_0, %c0_1] : memref<1x32x128xf32, #tpu.memory_space<vmem>>, vector<1x8x128xf32>
    %1 = vector.shape_cast %0 : vector<1x8x128xf32> to vector<8x128xf32>
    %c0_2 = arith.constant 0 : index
    %c8 = arith.constant 8 : index
    %c0_3 = arith.constant 0 : index
    %2 = vector.load %arg4[%c0_2, %c8, %c0_3] : memref<1x32x128xf32, #tpu.memory_space<vmem>>, vector<1x8x128xf32>
    %3 = vector.shape_cast %2 : vector<1x8x128xf32> to vector<8x128xf32>
    %c0_4 = arith.constant 0 : index
    %c16 = arith.constant 16 : index
    %c0_5 = arith.constant 0 : index
    %4 = vector.load %arg4[%c0_4, %c16, %c0_5] : memref<1x32x128xf32, #tpu.memory_space<vmem>>, vector<1x8x128xf32>
    %5 = vector.shape_cast %4 : vector<1x8x128xf32> to vector<8x128xf32>
    %c0_6 = arith.constant 0 : index
    %c24 = arith.constant 24 : index
    %c0_7 = arith.constant 0 : index
    %6 = vector.load %arg4[%c0_6, %c24, %c0_7] : memref<1x32x128xf32, #tpu.memory_space<vmem>>, vector<1x8x128xf32>
    %7 = vector.shape_cast %6 : vector<1x8x128xf32> to vector<8x128xf32>
    %c0_8 = arith.constant 0 : index
    %c0_9 = arith.constant 0 : index
    %8 = memref.load %arg2[%c0_8, %c0_9] : memref<3x4xf32, #tpu.memory_space<smem>>
    %9 = vector.broadcast %8 : f32 to vector<8x128xf32>
    %10 = arith.mulf %1, %9 : vector<8x128xf32>
    %c0_10 = arith.constant 0 : index
    %11 = memref.load %arg3[%c0_10] : memref<3xf32, #tpu.memory_space<smem>>
    %12 = vector.broadcast %11 : f32 to vector<8x128xf32>
    %13 = arith.addf %10, %12 : vector<8x128xf32>
    %c0_11 = arith.constant 0 : index
    %c1 = arith.constant 1 : index
    %14 = memref.load %arg2[%c0_11, %c1] : memref<3x4xf32, #tpu.memory_space<smem>>
    %15 = vector.broadcast %14 : f32 to vector<8x128xf32>
    %16 = arith.mulf %3, %15 : vector<8x128xf32>
    %17 = arith.addf %13, %16 : vector<8x128xf32>
    %c0_12 = arith.constant 0 : index
    %c2 = arith.constant 2 : index
    %18 = memref.load %arg2[%c0_12, %c2] : memref<3x4xf32, #tpu.memory_space<smem>>
    %19 = vector.broadcast %18 : f32 to vector<8x128xf32>
    %20 = arith.mulf %5, %19 : vector<8x128xf32>
    %21 = arith.addf %17, %20 : vector<8x128xf32>
    %c0_13 = arith.constant 0 : index
    %c3 = arith.constant 3 : index
    %22 = memref.load %arg2[%c0_13, %c3] : memref<3x4xf32, #tpu.memory_space<smem>>
    %23 = vector.broadcast %22 : f32 to vector<8x128xf32>
    %24 = arith.mulf %7, %23 : vector<8x128xf32>
    %25 = arith.addf %21, %24 : vector<8x128xf32>
    %c1_14 = arith.constant 1 : index
    %c0_15 = arith.constant 0 : index
    %26 = memref.load %arg2[%c1_14, %c0_15] : memref<3x4xf32, #tpu.memory_space<smem>>
    %27 = vector.broadcast %26 : f32 to vector<8x128xf32>
    %28 = arith.mulf %1, %27 : vector<8x128xf32>
    %c1_16 = arith.constant 1 : index
    %29 = memref.load %arg3[%c1_16] : memref<3xf32, #tpu.memory_space<smem>>
    %30 = vector.broadcast %29 : f32 to vector<8x128xf32>
    %31 = arith.addf %28, %30 : vector<8x128xf32>
    %c1_17 = arith.constant 1 : index
    %c1_18 = arith.constant 1 : index
    %32 = memref.load %arg2[%c1_17, %c1_18] : memref<3x4xf32, #tpu.memory_space<smem>>
    %33 = vector.broadcast %32 : f32 to vector<8x128xf32>
    %34 = arith.mulf %3, %33 : vector<8x128xf32>
    %35 = arith.addf %31, %34 : vector<8x128xf32>
    %c1_19 = arith.constant 1 : index
    %c2_20 = arith.constant 2 : index
    %36 = memref.load %arg2[%c1_19, %c2_20] : memref<3x4xf32, #tpu.memory_space<smem>>
    %37 = vector.broadcast %36 : f32 to vector<8x128xf32>
    %38 = arith.mulf %5, %37 : vector<8x128xf32>
    %39 = arith.addf %35, %38 : vector<8x128xf32>
    %c1_21 = arith.constant 1 : index
    %c3_22 = arith.constant 3 : index
    %40 = memref.load %arg2[%c1_21, %c3_22] : memref<3x4xf32, #tpu.memory_space<smem>>
    %41 = vector.broadcast %40 : f32 to vector<8x128xf32>
    %42 = arith.mulf %7, %41 : vector<8x128xf32>
    %43 = arith.addf %39, %42 : vector<8x128xf32>
    %c2_23 = arith.constant 2 : index
    %c0_24 = arith.constant 0 : index
    %44 = memref.load %arg2[%c2_23, %c0_24] : memref<3x4xf32, #tpu.memory_space<smem>>
    %45 = vector.broadcast %44 : f32 to vector<8x128xf32>
    %46 = arith.mulf %1, %45 : vector<8x128xf32>
    %c2_25 = arith.constant 2 : index
    %47 = memref.load %arg3[%c2_25] : memref<3xf32, #tpu.memory_space<smem>>
    %48 = vector.broadcast %47 : f32 to vector<8x128xf32>
    %49 = arith.addf %46, %48 : vector<8x128xf32>
    %c2_26 = arith.constant 2 : index
    %c1_27 = arith.constant 1 : index
    %50 = memref.load %arg2[%c2_26, %c1_27] : memref<3x4xf32, #tpu.memory_space<smem>>
    %51 = vector.broadcast %50 : f32 to vector<8x128xf32>
    %52 = arith.mulf %3, %51 : vector<8x128xf32>
    %53 = arith.addf %49, %52 : vector<8x128xf32>
    %c2_28 = arith.constant 2 : index
    %c2_29 = arith.constant 2 : index
    %54 = memref.load %arg2[%c2_28, %c2_29] : memref<3x4xf32, #tpu.memory_space<smem>>
    %55 = vector.broadcast %54 : f32 to vector<8x128xf32>
    %56 = arith.mulf %5, %55 : vector<8x128xf32>
    %57 = arith.addf %53, %56 : vector<8x128xf32>
    %c2_30 = arith.constant 2 : index
    %c3_31 = arith.constant 3 : index
    %58 = memref.load %arg2[%c2_30, %c3_31] : memref<3x4xf32, #tpu.memory_space<smem>>
    %59 = vector.broadcast %58 : f32 to vector<8x128xf32>
    %60 = arith.mulf %7, %59 : vector<8x128xf32>
    %61 = arith.addf %57, %60 : vector<8x128xf32>
    %62 = arith.maximumf %25, %43 : vector<8x128xf32>
    %63 = arith.maximumf %62, %61 : vector<8x128xf32>
    %64 = arith.subf %25, %63 : vector<8x128xf32>
    %65 = math.exp %64 : vector<8x128xf32>
    %66 = arith.subf %43, %63 : vector<8x128xf32>
    %67 = math.exp %66 : vector<8x128xf32>
    %68 = arith.subf %61, %63 : vector<8x128xf32>
    %69 = math.exp %68 : vector<8x128xf32>
    %70 = arith.addf %65, %67 : vector<8x128xf32>
    %71 = arith.addf %70, %69 : vector<8x128xf32>
    %72 = tpu.reciprocal %71 {approx = true} : vector<8x128xf32> -> vector<8x128xf32>
    %73 = arith.mulf %71, %72 : vector<8x128xf32>
    %cst = arith.constant 2.000000e+00 : f32
    %74 = vector.broadcast %cst : f32 to vector<8x128xf32>
    %75 = arith.subf %74, %73 : vector<8x128xf32>
    %76 = arith.mulf %72, %75 : vector<8x128xf32>
    %77 = arith.mulf %65, %76 : vector<8x128xf32>
    %c0_32 = arith.constant 0 : index
    %c0_33 = arith.constant 0 : index
    %c0_34 = arith.constant 0 : index
    %78 = vector.load %arg5[%c0_32, %c0_33, %c0_34] : memref<1x24x128xf32, #tpu.memory_space<vmem>>, vector<1x8x128xf32>
    %79 = vector.shape_cast %78 : vector<1x8x128xf32> to vector<8x128xf32>
    %80 = vector.shape_cast %77 : vector<8x128xf32> to vector<1x8x128xf32>
    tpu.vector_store %arg5[%c0_32, %c0_33, %c0_34], %80 {strides = array<i32>} : memref<1x24x128xf32, #tpu.memory_space<vmem>>, vector<1x8x128xf32>,
    %81 = arith.mulf %67, %76 : vector<8x128xf32>
    %c0_35 = arith.constant 0 : index
    %c8_36 = arith.constant 8 : index
    %c0_37 = arith.constant 0 : index
    %82 = vector.load %arg5[%c0_35, %c8_36, %c0_37] : memref<1x24x128xf32, #tpu.memory_space<vmem>>, vector<1x8x128xf32>
    %83 = vector.shape_cast %82 : vector<1x8x128xf32> to vector<8x128xf32>
    %84 = vector.shape_cast %81 : vector<8x128xf32> to vector<1x8x128xf32>
    tpu.vector_store %arg5[%c0_35, %c8_36, %c0_37], %84 {strides = array<i32>} : memref<1x24x128xf32, #tpu.memory_space<vmem>>, vector<1x8x128xf32>,
    %85 = arith.mulf %69, %76 : vector<8x128xf32>
    %c0_38 = arith.constant 0 : index
    %c16_39 = arith.constant 16 : index
    %c0_40 = arith.constant 0 : index
    %86 = vector.load %arg5[%c0_38, %c16_39, %c0_40] : memref<1x24x128xf32, #tpu.memory_space<vmem>>, vector<1x8x128xf32>
    %87 = vector.shape_cast %86 : vector<1x8x128xf32> to vector<8x128xf32>
    %88 = vector.shape_cast %85 : vector<8x128xf32> to vector<1x8x128xf32>
    tpu.vector_store %arg5[%c0_38, %c16_39, %c0_40], %88 {strides = array<i32>} : memref<1x24x128xf32, #tpu.memory_space<vmem>>, vector<1x8x128xf32>,
    return
  }
  func.func @transform_0(%arg0: i32, %arg1: i32, %arg2: memref<3x4xf32, #tpu.memory_space<smem>>, %arg3: memref<3xf32, #tpu.memory_space<smem>>) -> (i32, i32, i32) {
    %c0_i32 = arith.constant 0 : i32
    %c0_i32_0 = arith.constant 0 : i32
    return %arg0, %c0_i32, %arg1 : i32, i32, i32
  }
  func.func @transform_1(%arg0: i32, %arg1: i32, %arg2: memref<3x4xf32, #tpu.memory_space<smem>>, %arg3: memref<3xf32, #tpu.memory_space<smem>>) -> (i32, i32, i32) {
    %c0_i32 = arith.constant 0 : i32
    %c0_i32_0 = arith.constant 0 : i32
    return %arg0, %c0_i32, %arg1 : i32, i32, i32
  }
}

</mosaic_0001>

<llo_original>
// kernel: tpu_custom_call.1
$region0: #{tpu_custom_call.1}
  #allocation0 [shape = 'u32[]', space=smem, size = 0x4, offset = 0x4, fixed_abs, tag = 'smem constant byte address 0x4 - core index']
  #allocation1 [shape = 'u32[144,128]{1,0:T(1,128)}', space=vmem, size = 0x12000, scoped, tag = 'internal scratch']
  #allocation2 [shape = 's32[1]{0}', space=sflag, size = 0x4, scoped, tag = 'scoped memory for tpu_custom_call.1']
  #allocation3 [shape = 'u8[2048]{0}', space=smem, size = 0x800, scoped, tag = 'prefetched SMEM operand 0']
  #allocation4 [shape = 'u8[512]{0}', space=smem, size = 0x200, scoped, tag = 'prefetched SMEM operand 1']
  %s0 = inlined_call_operand.hbm [shape: f32[3,4], index: 0, kind: input, shape index: {}]
  %s1 = inlined_call_operand.vmem [shape: f32[3], index: 1, kind: input, shape index: {}]
  %s2 = inlined_call_operand.hbm [shape: f32[2,32,256], index: 2, kind: input, shape index: {}]
  %s3 = inlined_call_operand.hbm [shape: f32[2,24,256], index: 3, kind: output, shape index: {}]
  %s4 = sld [smem:[#allocation0]]
  $region41: #{tpu_custom_call.1} parent=0
    _
  %s6 = ssub.s32 1, %s4
  %s7 = scalar_select 0, %s6, %s4
  %9 = dma.hbm_to_smem %s0, 64, [#allocation3], [#allocation2]
  %s10 = sshll.u32 %s1, 4
  %s11 = int_to_ptr.vmem [resolvable:$true] %s10
  %13 = dma.vmem_to_smem %s11, 16, [#allocation4], [#allocation2]
  %14 = dma.done [#allocation2], 80
  %15 = sfence
  $region1: #{tpu_custom_call.1} parent=0
    #allocation5 [shape = 'u8[32768]{0}', space=vmem, size = 0x8000, scoped, tag = 'input window, operand 2']
    #allocation6 [shape = 's32[2]{0}', space=sflag, size = 0x8, scoped, tag = 'scoped memory for tpu_custom_call.1']
    #allocation7 [shape = 's32[2]{0}', space=sflag, size = 0x8, scoped, tag = 'scoped memory for tpu_custom_call.1']
    #allocation8 [shape = 'u8[24576]{0}', space=vmem, size = 0x6000, scoped, tag = 'output window, operand 0']
    %16 = vsyncpa [#allocation6], 0
    %s17 = scalar_lea.sflag [#allocation6], 1
    %18 = vsyncpa %s17, 0
    %19 = vsyncpa [#allocation7], 0
    %s20 = scalar_lea.sflag [#allocation7], 1
    %21 = vsyncpa %s20, 0
    loop: start=0, step=1, limit=6
    $region2: #{tpu_custom_call.1} parent=1 // loop_pre_header
      _
    $region3: #{tpu_custom_call.1} parent=1 // loop_header
      %s23 = sphi 0, %s27
      %p24 = scmp.ge.s32.totalorder %s23, 6
      %s30 = sphi 0, %s42
      %s31 = sphi 0, %s38
      %s32 = sphi 0, %s30
      %s33 = sphi 0, %s31
      %s34 = sphi 0, %s32
      %s35 = sphi 0, %s33
      %s47 = sphi 0, %s49
      %s50 = sphi 0, %s47
      %s51 = sphi 0, %s50
      %s67 = sphi 0, %s51
      %s75 = sphi 0, %s77
      %s78 = sphi 0, %s75
      %s79 = sphi 0, %s78
      %s95 = sphi 0, %s79
    $region4: #{tpu_custom_call.1} parent=1 // loop_header_branch
      %26 = sbr.rel (%p24) target = $region8
    $region5: #{tpu_custom_call.1} parent=1 // loop_body
      %s28 = ssub.s32 %s23, 1
      %s29 = ssub.s32 %s23, 2
      %s36 = sadd.s32 1, %s31
      %p37 = scmp.ge.s32.totalorder %s36, 2
      %s38 = scalar_select %p37, 0, %s36
      %s39 = sadd.s32 1, %s30
      %s40 = scalar_select %p37, %s39, %s30
      %p41 = scmp.ge.s32.totalorder %s40, 2
      %s42 = scalar_select %p41, 0, %s40
      %s43 = ssub.s32 %s30, %s42
      %s44 = ssub.s32 %s31, %s38
      %s45 = sor.u32 %s43, %s44
      %p46 = scmp.eq.s32.totalorder %s45, 0
      %s48 = sadd.s32 %s47, 1
      %s49 = scalar_select %p46, %s47, %s48
      %p52 = pneg %p46
      %p53 = scmp.eq.s32.totalorder %s23, 3
      %p54 = por %p52, %p53
      %p55 = scmp.ne.s32.totalorder %s47, %s50
      %p56 = scmp.eq.s32.totalorder %s23, 0
      %p57 = por %p55, %p56
      %p58 = scmp.ne.s32.totalorder %s47, %s50
      %p59 = scmp.eq.s32.totalorder %s28, 3
      %p60 = por %p58, %p59
      %p61 = scmp.ne.s32.totalorder %s50, %s51
      %p62 = scmp.eq.s32.totalorder %s28, 0
      %p63 = por %p61, %p62
      %p64 = scmp.ne.s32.totalorder %s50, %s51
      %p65 = scmp.eq.s32.totalorder %s29, 3
      %p66 = por %p64, %p65
      %p68 = scmp.ne.s32.totalorder %s51, %s67
      %p69 = scmp.eq.s32.totalorder %s29, 0
      %p70 = por %p68, %p69
      %s71 = ssub.s32 %s30, %s42
      %s72 = ssub.s32 %s31, %s38
      %s73 = sor.u32 %s71, %s72
      %p74 = scmp.eq.s32.totalorder %s73, 0
      %s76 = sadd.s32 %s75, 1
      %s77 = scalar_select %p74, %s75, %s76
      %p80 = pneg %p74
      %p81 = scmp.eq.s32.totalorder %s23, 3
      %p82 = por %p80, %p81
      %p83 = scmp.ne.s32.totalorder %s75, %s78
      %p84 = scmp.eq.s32.totalorder %s23, 0
      %p85 = por %p83, %p84
      %p86 = scmp.ne.s32.totalorder %s75, %s78
      %p87 = scmp.eq.s32.totalorder %s28, 3
      %p88 = por %p86, %p87
      %p89 = scmp.ne.s32.totalorder %s78, %s79
      %p90 = scmp.eq.s32.totalorder %s28, 0
      %p91 = por %p89, %p90
      %p92 = scmp.ne.s32.totalorder %s78, %s79
      %p93 = scmp.eq.s32.totalorder %s29, 3
      %p94 = por %p92, %p93
      %p96 = scmp.ne.s32.totalorder %s79, %s95
      %p97 = scmp.eq.s32.totalorder %s29, 0
      %p98 = por %p96, %p97
      %p99 = scmp.le.s32.totalorder 1, %s23
      %p100 = scmp.lt.s32.totalorder %s23, 5
      %p101 = pnand %p99, %p100
      %p102 = pneg %p101
      // Predicated region
      $region9: #{tpu_custom_call.1} parent=5 // pred_check
        _
      $region10: #{tpu_custom_call.1} parent=5 // pred_check_branch
        %104 = sbr.rel (%p101) target = $region12
      $region11: #{tpu_custom_call.1} parent=5 // pred_region
        %s105 = ssub.s32 %s23, 1
      $region12: #{tpu_custom_call.1} parent=5 // pred_fallthru
        _
      %p106 = scmp.lt.s32.totalorder %s23, 4
      // Predicated region
      $region13: #{tpu_custom_call.1} parent=5 // pred_check
        %p107 = pneg %p106
      $region14: #{tpu_custom_call.1} parent=5 // pred_check_branch
        %109 = sbr.rel (%p107) target = $region16
      $region15: #{tpu_custom_call.1} parent=5 // pred_region
        // Predicated region
        $region17: #{tpu_custom_call.1} parent=15 // pred_check
          %p110 = pneg %p57
        $region18: #{tpu_custom_call.1} parent=15 // pred_check_branch
          %112 = sbr.rel (%p110) target = $region20
        $region19: #{tpu_custom_call.1} parent=15 // pred_region
          %s113 = sand.u32 %s47, 1
          %s114 = scalar_lea.sflag [#allocation6], %s113
          %s115 = sand.u32 %s47, 1
          %s116 = smul.addr %s115, 32
          %s117 = scalar_lea.vmem [#allocation5], %s116
          %s119 = ssub.s32 512, 512
          %120 = vsyncadd %s114, %s119
          %s121 = smul.addr %s30, 8
          %s122 = sadd.s32 %s31, %s121
          %s123 = smul.addr %s122, 128
          %s124 = scalar_lea.hbm %s2, %s123
          %s125 = sshll.u32 %s117, 4
          %s126 = int_to_ptr.vmem [resolvable:$true] %s125
          %131 = dma.hbm_to_vmem [thread:$0]  %s124, 512, %s126, %s114, 256, 128, 8
        $region20: #{tpu_custom_call.1} parent=15 // pred_fallthru
          _
      $region16: #{tpu_custom_call.1} parent=5 // pred_fallthru
        _
      %p132 = scmp.le.s32.totalorder 1, %s23
      %p133 = scmp.lt.s32.totalorder %s23, 5
      %p134 = pnand %p132, %p133
      %p135 = pneg %p134
      // Predicated region
      $region21: #{tpu_custom_call.1} parent=5 // pred_check
        _
      $region22: #{tpu_custom_call.1} parent=5 // pred_check_branch
        %137 = sbr.rel (%p134) target = $region24
      $region23: #{tpu_custom_call.1} parent=5 // pred_region
        %s138 = ssub.s32 %s23, 1
        %s139 = sand.u32 %s50, 1
        %s140 = scalar_lea.sflag [#allocation6], %s139
        %s141 = sand.u32 %s50, 1
        %s142 = smul.addr %s141, 32
        %s143 = scalar_lea.vmem [#allocation5], %s142
        // Predicated region
        $region25: #{tpu_custom_call.1} parent=23 // pred_check
          %p144 = pneg %p63
        $region26: #{tpu_custom_call.1} parent=23 // pred_check_branch
          %146 = sbr.rel (%p144) target = $region28
        $region27: #{tpu_custom_call.1} parent=23 // pred_region
          %147 = dma.done %s140, 512
        $region28: #{tpu_custom_call.1} parent=23 // pred_fallthru
          _
        %s148 = sand.u32 %s50, 1
        %s149 = scalar_lea.sflag [#allocation6], %s148
        %s150 = sand.u32 %s50, 1
        %s151 = smul.addr %s150, 32
        %s152 = scalar_lea.vmem [#allocation5], %s151
        %p153 = pneg %p63
        %p154 = pneg %p60
        %p155 = pneg %p91
        %p156 = pneg %p88
        %s157 = sand.u32 %s78, 1
        %s158 = scalar_lea.sflag [#allocation7], %s157
        %s159 = sand.u32 %s78, 1
        %s160 = smul.addr %s159, 24
        %s161 = scalar_lea.vmem [#allocation8], %s160
        %v162 = vld [vmem:[%s143] sm:$0xff]
        %v163 = vld [vmem:[%s143 + $0x8] sm:$0xff]
        %v164 = vld [vmem:[%s143 + $0x10] sm:$0xff]
        %v165 = vld [vmem:[%s143 + $0x18] sm:$0xff]
        %s166 = sld [smem:[#allocation3]]
        %v167 = vstv %s166
        %v168 = vmul.f32 %v162, %v167
        %s169 = sld [smem:[#allocation4]]
        %v170 = vstv %s169
        %v171 = vadd.f32 %v168, %v170
        %s172 = sld [smem:[#allocation3 + $0x1]]
        %v173 = vstv %s172
        %v174 = vmul.f32 %v163, %v173
        %v175 = vadd.f32 %v171, %v174
        %s176 = sld [smem:[#allocation3 + $0x2]]
        %v177 = vstv %s176
        %v178 = vmul.f32 %v164, %v177
        %v179 = vadd.f32 %v175, %v178
        %s180 = sld [smem:[#allocation3 + $0x3]]
        %v181 = vstv %s180
        %v182 = vmul.f32 %v165, %v181
        %v183 = vadd.f32 %v179, %v182
        %s184 = sld [smem:[#allocation3 + $0x80]]
        %v185 = vstv %s184
        %v186 = vmul.f32 %v162, %v185
        %s187 = sld [smem:[#allocation4 + $0x1]]
        %v188 = vstv %s187
        %v189 = vadd.f32 %v186, %v188
        %s190 = sld [smem:[#allocation3 + $0x81]]
        %v191 = vstv %s190
        %v192 = vmul.f32 %v163, %v191
        %v193 = vadd.f32 %v189, %v192
        %s194 = sld [smem:[#allocation3 + $0x82]]
        %v195 = vstv %s194
        %v196 = vmul.f32 %v164, %v195
        %v197 = vadd.f32 %v193, %v196
        %s198 = sld [smem:[#allocation3 + $0x83]]
        %v199 = vstv %s198
        %v200 = vmul.f32 %v165, %v199
        %v201 = vadd.f32 %v197, %v200
        %s202 = sld [smem:[#allocation3 + $0x100]]
        %v203 = vstv %s202
        %v204 = vmul.f32 %v162, %v203
        %s205 = sld [smem:[#allocation4 + $0x2]]
        %v206 = vstv %s205
        %v207 = vadd.f32 %v204, %v206
        %s208 = sld [smem:[#allocation3 + $0x101]]
        %v209 = vstv %s208
        %v210 = vmul.f32 %v163, %v209
        %v211 = vadd.f32 %v207, %v210
        %s212 = sld [smem:[#allocation3 + $0x102]]
        %v213 = vstv %s212
        %v214 = vmul.f32 %v164, %v213
        %v215 = vadd.f32 %v211, %v214
        %s216 = sld [smem:[#allocation3 + $0x103]]
        %v217 = vstv %s216
        %v218 = vmul.f32 %v165, %v217
        %v219 = vadd.f32 %v215, %v218
        %v220 = vmax.f32 %v183, %v201
        %v221 = vmax.f32 %v220, %v219
        %v222 = vsub.f32 %v183, %v221
        %v223 = vmul.f32 %v222, 1.442695
        %v224 = vpow.pop %v223
        %v225 = vsub.f32 %v201, %v221
        %v226 = vmul.f32 %v225, 1.442695
        %v227 = vpow.pop %v226
        %v228 = vsub.f32 %v219, %v221
        %v229 = vmul.f32 %v228, 1.442695
        %v230 = vpow.pop %v229
        %v231 = vadd.f32 %v224, %v227
        %v232 = vadd.f32 %v231, %v230
        %v233 = vrcp.pop %v232
        %v234 = vmul.f32 %v232, %v233
        %v235 = vsub.f32 2.0, %v234
        %v236 = vmul.f32 %v233, %v235
        %v237 = vmul.f32 %v224, %v236
        %238 = vst [vmem:[%s161] sm:$0xff] %v237
        %v239 = vmul.f32 %v227, %v236
        %240 = vst [vmem:[%s161 + $0x8] sm:$0xff] %v239
        %v241 = vmul.f32 %v230, %v236
        %242 = vst [vmem:[%s161 + $0x10] sm:$0xff] %v241
        %s243 = sand.u32 %s78, 1
        %s244 = scalar_lea.sflag [#allocation7], %s243
        %s245 = sand.u32 %s78, 1
        %s246 = smul.addr %s245, 24
        %s247 = scalar_lea.vmem [#allocation8], %s246
        // Predicated region
        $region29: #{tpu_custom_call.1} parent=23 // pred_check
          %p248 = pneg %p88
        $region30: #{tpu_custom_call.1} parent=23 // pred_check_branch
          %250 = sbr.rel (%p248) target = $region32
        $region31: #{tpu_custom_call.1} parent=23 // pred_region
          %s252 = ssub.s32 384, 384
          %253 = vsyncadd %s244, %s252
          %s254 = smul.addr %s32, 6
          %s255 = sadd.s32 %s33, %s254
          %s256 = smul.addr %s255, 128
          %s257 = scalar_lea.hbm %s3, %s256
          %s258 = sshll.u32 %s247, 4
          %s259 = int_to_ptr.vmem [resolvable:$true] %s258
          %264 = dma.vmem_to_hbm [thread:$0]  %s259, 384, %s257, %s244, 128, 256, 8
        $region32: #{tpu_custom_call.1} parent=23 // pred_fallthru
          _
      $region24: #{tpu_custom_call.1} parent=5 // pred_fallthru
        _
      %p265 = scmp.le.s32.totalorder 2, %s23
      // Predicated region
      $region33: #{tpu_custom_call.1} parent=5 // pred_check
        %p266 = pneg %p265
      $region34: #{tpu_custom_call.1} parent=5 // pred_check_branch
        %268 = sbr.rel (%p266) target = $region36
      $region35: #{tpu_custom_call.1} parent=5 // pred_region
        %s269 = ssub.s32 %s23, 2
        // Predicated region
        $region37: #{tpu_custom_call.1} parent=35 // pred_check
          %p270 = pneg %p94
        $region38: #{tpu_custom_call.1} parent=35 // pred_check_branch
          %272 = sbr.rel (%p270) target = $region40
        $region39: #{tpu_custom_call.1} parent=35 // pred_region
          %s273 = sand.u32 %s79, 1
          %s274 = scalar_lea.sflag [#allocation7], %s273
          %s275 = sand.u32 %s79, 1
          %s276 = smul.addr %s275, 24
          %s277 = scalar_lea.vmem [#allocation8], %s276
          %278 = dma.done %s274, 384
        $region40: #{tpu_custom_call.1} parent=35 // pred_fallthru
          _
      $region36: #{tpu_custom_call.1} parent=5 // pred_fallthru
        _
    $region6: #{tpu_custom_call.1} parent=1 // loop_footer
      %s27 = sadd.s32 1, %s23
    $region7: #{tpu_custom_call.1} parent=1 // loop_footer_branch
      %22 = sbr.rel target = $region3
    $region8: #{tpu_custom_call.1} parent=1 // loop_exit
      _
    %279 = vsyncpa [#allocation6], 1
    %s280 = scalar_lea.sflag [#allocation6], 1
    %281 = vsyncpa %s280, 1
    %282 = vsyncpa [#allocation7], 1
    %s283 = scalar_lea.sflag [#allocation7], 1
    %284 = vsyncpa %s283, 1

</llo_original>
